<compile_context>
chip_gen: v6e
topology: v6e:2x2x1
jax: 0.10.0
libtpu: 0.0.40
codegen_flags: <defaults>
</compile_context>

<pallas_src>
import jax
import jax.numpy as jnp
from jax.experimental import pallas as pl
from jax.experimental.pallas import tpu as pltpu


def _round_up(a: int, b: int) -> int:
    return (a + b - 1) // b * b


def _ff_kernel(x_ref, w1_ref, b1_ref, w2_ref, b2_ref, o_ref, acc_ref):
    # x_ref : (TM, D) bf16, w1_ref: (D, TH) bf16, b1_ref: (1, TH) f32
    # w2_ref: (TH, D) bf16, b2_ref: (1, D)  f32,  o_ref : (TM, D) out dtype
    # acc_ref: (TM, D) f32 scratch (partial sum over the H-reduction axis)
    k = pl.program_id(2)

    @pl.when(k == 0)
    def _():
        acc_ref[...] = jnp.zeros_like(acc_ref)

    h = jnp.dot(x_ref[...], w1_ref[...], preferred_element_type=jnp.float32)
    h = jnp.maximum(h + b1_ref[...], 0.0)                     # bias + ReLU in f32
    acc_ref[...] += jnp.dot(h.astype(jnp.bfloat16), w2_ref[...],
                            preferred_element_type=jnp.float32)

    @pl.when(k == pl.num_programs(2) - 1)
    def _():
        o_ref[...] = (acc_ref[...] + b2_ref[...]).astype(o_ref.dtype)


def feed_forward_pallas(x, w1, b1, w2, b2):
    """x: (E, M, D); w1: (E, D, H); b1: (E, H); w2: (E, H, D); b2: (E, D)."""
    E, M, D = x.shape
    H = w1.shape[-1]
    out_dtype = x.dtype
    out_isz = jnp.dtype(out_dtype).itemsize

    # Row tile: multiple of 8 sublanes, keep the f32 accumulator (TM, D) under
    # ~2 MiB, cap at 512 rows.
    tm_cap = max(8, min(512, (2 * 1024 * 1024 // max(D * 4, 1)) // 8 * 8))
    TM = min(tm_cap, _round_up(M, 8))
    M_pad = _round_up(M, TM)
    if M_pad != M:
        x = jnp.pad(x, ((0, 0), (0, M_pad - M), (0, 0)))
    m_tiles = M_pad // TM

    # d_internal tile: keep double-buffered weight tiles + f32 hidden tile under
    # ~24 MiB.  If the full weights fit (common case), do not tile H at all so
    # the weights stay resident in VMEM across every row tile of an ensemble.
    per_h_bytes = 2 * (2 * D * 2) + TM * 4 + 2 * 4   # W1 col + W2 row (x2 buf) + h col + b1
    TH = (24 * 1024 * 1024) // per_h_bytes
    if TH >= H:
        TH = H
    else:
        TH = max(128, TH // 128 * 128)
    H_pad = _round_up(H, TH)
    k_tiles = H_pad // TH
    if H_pad != H:
        # Zero padding along H is exact: relu(0*x + 0) = 0 and zero W2 rows
        # contribute nothing to the output.
        w1 = jnp.pad(w1, ((0, 0), (0, 0), (0, H_pad - H)))
        b1 = jnp.pad(b1, ((0, 0), (0, H_pad - H)))
        w2 = jnp.pad(w2, ((0, 0), (0, H_pad - H), (0, 0)))

    x_bf = x.astype(jnp.bfloat16)
    w1_bf = w1.astype(jnp.bfloat16)
    w2_bf = w2.astype(jnp.bfloat16)
    b1r = b1.reshape(E, 1, H_pad).astype(jnp.float32)
    b2r = b2.reshape(E, 1, D).astype(jnp.float32)

    # VMEM budget from the actual footprint (double-buffered BlockSpec inputs
    # and output, plus accumulator scratch and the f32 hidden intermediate),
    # with headroom; clamp to [32 MiB, 64 MiB] (safe on v5e/v6e/v7x).
    needed = (2 * TM * D * 2                       # x tiles (bf16)
              + 2 * TM * D * out_isz               # out tiles
              + 2 * (D * TH + TH * D) * 2          # W1/W2 tiles (bf16)
              + 2 * (TH + D) * 4                   # biases (f32)
              + TM * D * 4                         # accumulator scratch
              + TM * TH * 4)                       # hidden intermediate
    vmem_bytes = int(min(max(int(1.5 * needed), 32 * 1024 * 1024),
                         64 * 1024 * 1024))

    flops = 4 * E * M_pad * D * H_pad              # two matmuls, 2*M*D*H each
    w_refetch = m_tiles if k_tiles > 1 else 1      # weights re-read only when H is tiled
    bytes_accessed = (E * M_pad * D * 2                         # x (bf16)
                      + E * w_refetch * (D * H_pad + H_pad * D) * 2   # weights (bf16)
                      + E * (H_pad + D) * 4                     # biases (f32)
                      + E * M_pad * D * out_isz)                # out

    out = pl.pallas_call(
        _ff_kernel,
        out_shape=jax.ShapeDtypeStruct((E, M_pad, D), out_dtype),
        grid_spec=pltpu.PrefetchScalarGridSpec(
            num_scalar_prefetch=0,
            # Ensemble outer, row tiles middle, H-reduction innermost.
            grid=(E, m_tiles, k_tiles),
            in_specs=[
                pl.BlockSpec((None, TM, D), lambda e, m, k: (e, m, 0)),   # x rows
                pl.BlockSpec((None, D, TH), lambda e, m, k: (e, 0, k)),   # W1
                pl.BlockSpec((None, 1, TH), lambda e, m, k: (e, 0, k)),   # b1
                pl.BlockSpec((None, TH, D), lambda e, m, k: (e, k, 0)),   # W2
                pl.BlockSpec((None, 1, D), lambda e, m, k: (e, 0, 0)),    # b2
            ],
            out_specs=pl.BlockSpec((None, TM, D), lambda e, m, k: (e, m, 0)),
            scratch_shapes=[pltpu.VMEM((TM, D), jnp.float32)],
        ),
        compiler_params=pltpu.CompilerParams(
            dimension_semantics=("parallel", "parallel", "arbitrary"),
            vmem_limit_bytes=vmem_bytes,
        ),
        cost_estimate=pl.CostEstimate(
            flops=flops, transcendentals=0, bytes_accessed=bytes_accessed),
    )(x_bf, w1_bf, b1r, w2_bf, b2r)

    return out[:, :M, :]


class FeedForward:
    """JAX/Pallas port of supertransformerlib.Attention.FeedForward."""

    def __init__(self, d_model: int, d_internal: int = 2048, ensembles=None,
                 key=jax.random.PRNGKey(0)):
        if ensembles is None:
            e = 1
            self.has_ensembles = False
        else:
            e = ensembles
            self.has_ensembles = True
        self.d_model, self.d_internal, self.e = d_model, d_internal, e

        k1, k2, k3, k4 = jax.random.split(key, 4)
        # torch.nn.Linear-style uniform(-1/sqrt(fan_in), 1/sqrt(fan_in)) init.
        s1 = 1.0 / (d_model ** 0.5)
        s2 = 1.0 / (d_internal ** 0.5)
        self.w1 = jax.random.uniform(k1, (e, d_model, d_internal), jnp.float32, -s1, s1)
        self.b1 = jax.random.uniform(k2, (e, d_internal), jnp.float32, -s1, s1)
        self.w2 = jax.random.uniform(k3, (e, d_internal, d_model), jnp.float32, -s2, s2)
        self.b2 = jax.random.uniform(k4, (e, d_model), jnp.float32, -s2, s2)

    def __call__(self, x):
        # x: (..., [ensemble], item, d_model)
        if not self.has_ensembles:
            x = x[..., None, :, :]            # add ensemble axis of size 1 at -3
        orig_shape = x.shape
        E, S, D = orig_shape[-3], orig_shape[-2], orig_shape[-1]
        batch_shape = orig_shape[:-3]
        B = 1
        for d in batch_shape:
            B *= d
        # (B, E, S, D) -> (E, B*S, D): rows of the same ensemble are contiguous,
        # so one resident weight set serves all row tiles of that ensemble.
        xf = x.reshape(B, E, S, D)
        xf = jnp.transpose(xf, (1, 0, 2, 3)).reshape(E, B * S, D)

        yf = feed_forward_pallas(xf, self.w1, self.b1, self.w2, self.b2)

        y = jnp.transpose(yf.reshape(E, B, S, D), (1, 0, 2, 3)).reshape(orig_shape)
        if not self.has_ensembles:
            y = y[..., 0, :, :]
        return y


def _reference(x, w1, b1, w2, b2, has_ensembles):
    # Pure-JAX f32 reference mirroring the torch module.
    if not has_ensembles:
        x = x[..., None, :, :]
    h = jnp.einsum("...esd,edh->...esh", x, w1) + b1[..., :, None, :]
    h = jnp.maximum(h, 0.0)
    y = jnp.einsum("...esh,ehd->...esd", h, w2) + b2[..., :, None, :]
    if not has_ensembles:
        y = y[..., 0, :, :]
    return y


if __name__ == "__main__":
    d_model, d_internal = 32, 64
    batch, ensembles, items = 2, 2, 8

    key = jax.random.PRNGKey(0)
    k_in, k_in2, k_params = jax.random.split(key, 3)

    # Ensembled case: input (batch, ensembles, item, d_model)
    ff_ens = FeedForward(d_model, d_internal, ensembles=ensembles, key=k_params)
    x_ens = jax.random.normal(k_in, (batch, ensembles, items, d_model), jnp.float32)
    y_ens = jax.block_until_ready(ff_ens(x_ens))
    y_ens_ref = _reference(x_ens, ff_ens.w1, ff_ens.b1, ff_ens.w2, ff_ens.b2, True)
    assert y_ens.shape == x_ens.shape
    # bf16 matmul operands (f32 accumulate) => compare with bf16-level tolerance.
    assert jnp.allclose(y_ens, y_ens_ref, atol=5e-2, rtol=5e-2)

    # Non-ensembled case: input (batch, item, d_model)
    ff = FeedForward(d_model, d_internal, ensembles=None, key=k_params)
    x = jax.random.normal(k_in2, (batch, items, d_model), jnp.float32)
    y = jax.block_until_ready(ff(x))
    y_ref = _reference(x, ff.w1, ff.b1, ff.w2, ff.b2, False)
    assert y.shape == x.shape
    assert jnp.allclose(y, y_ref, atol=5e-2, rtol=5e-2)

    print("KERNEL_OK")
</pallas_src>

<mosaic_0001>
module attributes {stable_mosaic.version = 11 : i64} {
  func.func @_ff_kernel(%arg0: i32, %arg1: i32, %arg2: i32, %arg3: memref<1x16x32xbf16, #tpu.memory_space<vmem>>, %arg4: memref<1x32x64xbf16, #tpu.memory_space<vmem>>, %arg5: memref<1x1x64xf32, #tpu.memory_space<vmem>>, %arg6: memref<1x64x32xbf16, #tpu.memory_space<vmem>>, %arg7: memref<1x1x32xf32, #tpu.memory_space<vmem>>, %arg8: memref<1x16x32xf32, #tpu.memory_space<vmem>>, %arg9: memref<16x32xf32, #tpu.memory_space<vmem>>) attributes {dimension_semantics = [#tpu.dimension_semantics<parallel>, #tpu.dimension_semantics<parallel>, #tpu.dimension_semantics<arbitrary>], iteration_bounds = array<i64: 2, 1, 1>, scalar_prefetch = 0 : i64, scratch_operands = 1 : i64, tpu.core_type = #tpu.core_type<tc>, window_params = [{transform_indices = @transform_0, window_bounds = array<i64: 1, 16, 32>}, {transform_indices = @transform_1, window_bounds = array<i64: 1, 32, 64>}, {transform_indices = @transform_2, window_bounds = array<i64: 1, 1, 64>}, {transform_indices = @transform_3, window_bounds = array<i64: 1, 64, 32>}, {transform_indices = @transform_4, window_bounds = array<i64: 1, 1, 32>}, {transform_indices = @transform_5, window_bounds = array<i64: 1, 16, 32>}]} {
    %c0_i32 = arith.constant 0 : i32
    %0 = arith.cmpi eq, %arg2, %c0_i32 : i32
    %1 = arith.extui %0 : i1 to i32
    %c0_i32_0 = arith.constant 0 : i32
    %2 = arith.cmpi ne, %1, %c0_i32_0 : i32
    scf.if %2 {
      %cst_20 = arith.constant 0.000000e+00 : f32
      %24 = vector.broadcast %cst_20 : f32 to vector<16x32xf32>
      %c0_21 = arith.constant 0 : index
      %c0_22 = arith.constant 0 : index
      %25 = vector.load %arg9[%c0_21, %c0_22] : memref<16x32xf32, #tpu.memory_space<vmem>>, vector<16x32xf32>
      tpu.vector_store %arg9[%c0_21, %c0_22], %24 {strides = array<i32>} : memref<16x32xf32, #tpu.memory_space<vmem>>, vector<16x32xf32>,
    } else {
    }
    %c0 = arith.constant 0 : index
    %c0_1 = arith.constant 0 : index
    %c0_2 = arith.constant 0 : index
    %3 = vector.load %arg3[%c0, %c0_1, %c0_2] : memref<1x16x32xbf16, #tpu.memory_space<vmem>>, vector<1x16x32xbf16>
    %4 = vector.shape_cast %3 : vector<1x16x32xbf16> to vector<16x32xbf16>
    %c0_3 = arith.constant 0 : index
    %c0_4 = arith.constant 0 : index
    %c0_5 = arith.constant 0 : index
    %5 = vector.load %arg4[%c0_3, %c0_4, %c0_5] : memref<1x32x64xbf16, #tpu.memory_space<vmem>>, vector<1x32x64xbf16>
    %6 = vector.shape_cast %5 : vector<1x32x64xbf16> to vector<32x64xbf16>
    %cst = arith.constant dense<0.000000e+00> : vector<16x64xf32>
    %7 = tpu.matmul %4, %6, %cst {dimension_numbers = #tpu.dot_dimension_numbers<[1], [0], [0], [1], [0, 0, 1, 1], [], []>} : vector<16x32xbf16>, vector<32x64xbf16>, vector<16x64xf32> -> vector<16x64xf32>
    %c0_6 = arith.constant 0 : index
    %c0_7 = arith.constant 0 : index
    %c0_8 = arith.constant 0 : index
    %8 = vector.load %arg5[%c0_6, %c0_7, %c0_8] : memref<1x1x64xf32, #tpu.memory_space<vmem>>, vector<1x1x64xf32>
    %9 = vector.shape_cast %8 : vector<1x1x64xf32> to vector<1x64xf32>
    %10 = vector.broadcast %9 : vector<1x64xf32> to vector<16x64xf32>
    %11 = arith.addf %7, %10 : vector<16x64xf32>
    %cst_9 = arith.constant 0.000000e+00 : f32
    %12 = vector.broadcast %cst_9 : f32 to vector<16x64xf32>
    %13 = arith.maximumf %11, %12 : vector<16x64xf32>
    %c0_10 = arith.constant 0 : index
    %c0_11 = arith.constant 0 : index
    %14 = vector.load %arg9[%c0_10, %c0_11] : memref<16x32xf32, #tpu.memory_space<vmem>>, vector<16x32xf32>
    %15 = arith.truncf %13 : vector<16x64xf32> to vector<16x64xbf16>
    %c0_12 = arith.constant 0 : index
    %c0_13 = arith.constant 0 : index
    %c0_14 = arith.constant 0 : index
    %16 = vector.load %arg6[%c0_12, %c0_13, %c0_14] : memref<1x64x32xbf16, #tpu.memory_space<vmem>>, vector<1x64x32xbf16>
    %17 = vector.shape_cast %16 : vector<1x64x32xbf16> to vector<64x32xbf16>
    %cst_15 = arith.constant dense<0.000000e+00> : vector<16x32xf32>
    %18 = tpu.matmul %15, %17, %cst_15 {dimension_numbers = #tpu.dot_dimension_numbers<[1], [0], [0], [1], [0, 0, 1, 1], [], []>} : vector<16x64xbf16>, vector<64x32xbf16>, vector<16x32xf32> -> vector<16x32xf32>
    %19 = arith.addf %14, %18 : vector<16x32xf32>
    %c0_16 = arith.constant 0 : index
    %c0_17 = arith.constant 0 : index
    %20 = vector.load %arg9[%c0_16, %c0_17] : memref<16x32xf32, #tpu.memory_space<vmem>>, vector<16x32xf32>
    tpu.vector_store %arg9[%c0_16, %c0_17], %19 {strides = array<i32>} : memref<16x32xf32, #tpu.memory_space<vmem>>, vector<16x32xf32>,
    %c0_i32_18 = arith.constant 0 : i32
    %21 = arith.cmpi eq, %arg2, %c0_i32_18 : i32
    %22 = arith.extui %21 : i1 to i32
    %c0_i32_19 = arith.constant 0 : i32
    %23 = arith.cmpi ne, %22, %c0_i32_19 : i32
    scf.if %23 {
      %c0_20 = arith.constant 0 : index
      %c0_21 = arith.constant 0 : index
      %24 = vector.load %arg9[%c0_20, %c0_21] : memref<16x32xf32, #tpu.memory_space<vmem>>, vector<16x32xf32>
      %c0_22 = arith.constant 0 : index
      %c0_23 = arith.constant 0 : index
      %c0_24 = arith.constant 0 : index
      %25 = vector.load %arg7[%c0_22, %c0_23, %c0_24] : memref<1x1x32xf32, #tpu.memory_space<vmem>>, vector<1x1x32xf32>
      %26 = vector.shape_cast %25 : vector<1x1x32xf32> to vector<1x32xf32>
      %27 = vector.broadcast %26 : vector<1x32xf32> to vector<16x32xf32>
      %28 = arith.addf %24, %27 : vector<16x32xf32>
      %c0_25 = arith.constant 0 : index
      %c0_26 = arith.constant 0 : index
      %c0_27 = arith.constant 0 : index
      %29 = vector.load %arg8[%c0_25, %c0_26, %c0_27] : memref<1x16x32xf32, #tpu.memory_space<vmem>>, vector<1x16x32xf32>
      %30 = vector.shape_cast %29 : vector<1x16x32xf32> to vector<16x32xf32>
      %31 = vector.shape_cast %28 : vector<16x32xf32> to vector<1x16x32xf32>
      tpu.vector_store %arg8[%c0_25, %c0_26, %c0_27], %31 {strides = array<i32>} : memref<1x16x32xf32, #tpu.memory_space<vmem>>, vector<1x16x32xf32>,
    } else {
    }
    return
  }
  func.func @transform_0(%arg0: i32, %arg1: i32, %arg2: i32) -> (i32, i32, i32) {
    %c0_i32 = arith.constant 0 : i32
    %c0_i32_0 = arith.constant 0 : i32
    return %arg0, %arg1, %c0_i32 : i32, i32, i32
  }
  func.func @transform_1(%arg0: i32, %arg1: i32, %arg2: i32) -> (i32, i32, i32) {
    %c0_i32 = arith.constant 0 : i32
    %c0_i32_0 = arith.constant 0 : i32
    return %arg0, %c0_i32, %arg2 : i32, i32, i32
  }
  func.func @transform_2(%arg0: i32, %arg1: i32, %arg2: i32) -> (i32, i32, i32) {
    %c0_i32 = arith.constant 0 : i32
    %c0_i32_0 = arith.constant 0 : i32
    return %arg0, %c0_i32, %arg2 : i32, i32, i32
  }
  func.func @transform_3(%arg0: i32, %arg1: i32, %arg2: i32) -> (i32, i32, i32) {
    %c0_i32 = arith.constant 0 : i32
    %c0_i32_0 = arith.constant 0 : i32
    return %arg0, %arg2, %c0_i32 : i32, i32, i32
  }
  func.func @transform_4(%arg0: i32, %arg1: i32, %arg2: i32) -> (i32, i32, i32) {
    %c0_i32 = arith.constant 0 : i32
    %c0_i32_0 = arith.constant 0 : i32
    %c0_i32_1 = arith.constant 0 : i32
    return %arg0, %c0_i32, %c0_i32_0 : i32, i32, i32
  }
  func.func @transform_5(%arg0: i32, %arg1: i32, %arg2: i32) -> (i32, i32, i32) {
    %c0_i32 = arith.constant 0 : i32
    %c0_i32_0 = arith.constant 0 : i32
    return %arg0, %arg1, %c0_i32 : i32, i32, i32
  }
}

</mosaic_0001>

<llo_original>
// kernel: tpu_custom_call.1
$region0: #{tpu_custom_call.1}
  #allocation0 [shape = 'u32[]', space=smem, size = 0x4, offset = 0x4, fixed_abs, tag = 'smem constant byte address 0x4 - core index']
  #allocation1 [shape = 'u32[144,128]{1,0:T(1,128)}', space=vmem, size = 0x12000, scoped, tag = 'internal scratch']
  #allocation2 [shape = 'f32[16,32]{1,0:T(8,128)}', space=vmem, size = 0x2000, scoped, tag = 'scratch operand']
  %s0 = inlined_call_operand.vmem [shape: bf16[2,16,32], index: 0, kind: input, shape index: {}]
  %s1 = inlined_call_operand.vmem [shape: bf16[2,32,64], index: 1, kind: input, shape index: {}]
  %s2 = inlined_call_operand.vmem [shape: f32[2,1,64], index: 2, kind: input, shape index: {}]
  %s3 = inlined_call_operand.vmem [shape: bf16[2,64,32], index: 3, kind: input, shape index: {}]
  %s4 = inlined_call_operand.vmem [shape: f32[2,1,32], index: 4, kind: input, shape index: {}]
  %s5 = inlined_call_operand.hbm [shape: f32[2,16,32], index: 5, kind: output, shape index: {}]
  %s6 = sld [smem:[#allocation0]]
  $region61: #{tpu_custom_call.1} parent=0
    _
  %s8 = ssub.s32 1, %s6
  %s9 = scalar_select 0, %s8, %s6
  $region1: #{tpu_custom_call.1} parent=0
    #allocation3 [shape = 'u8[16384]{0}', space=vmem, size = 0x4000, scoped, tag = 'output window, operand 0']
    #allocation4 [shape = 's32[2]{0}', space=sflag, size = 0x8, scoped, tag = 'scoped memory for tpu_custom_call.1']
    %10 = vsyncpa [#allocation4], 0
    %s11 = scalar_lea.sflag [#allocation4], 1
    %12 = vsyncpa %s11, 0
    loop: start=0, step=1, limit=4
    $region2: #{tpu_custom_call.1} parent=1 // loop_pre_header
      _
    $region3: #{tpu_custom_call.1} parent=1 // loop_header
      %s14 = sphi 0, %s18
      %p15 = scmp.ge.s32.totalorder %s14, 4
      %s21 = sphi 0, %s40
      %s22 = sphi 0, %s36
      %s23 = sphi 0, %s32
      %s24 = sphi 0, %s21
      %s25 = sphi 0, %s22
      %s26 = sphi 0, %s23
      %s27 = sphi 0, %s24
      %s28 = sphi 0, %s25
      %s29 = sphi 0, %s26
      %s45 = sphi 0, %s47
      %s48 = sphi 0, %s45
      %s49 = sphi 0, %s48
      %s65 = sphi 0, %s49
      %s73 = sphi 0, %s75
      %s76 = sphi 0, %s73
      %s77 = sphi 0, %s76
      %s93 = sphi 0, %s77
      %s101 = sphi 0, %s103
      %s104 = sphi 0, %s101
      %s105 = sphi 0, %s104
      %s121 = sphi 0, %s105
      %s129 = sphi 0, %s131
      %s132 = sphi 0, %s129
      %s133 = sphi 0, %s132
      %s149 = sphi 0, %s133
      %s155 = sphi 0, %s157
      %s158 = sphi 0, %s155
      %s159 = sphi 0, %s158
      %s175 = sphi 0, %s159
      %s183 = sphi 0, %s185
      %s186 = sphi 0, %s183
      %s187 = sphi 0, %s186
      %s203 = sphi 0, %s187
    $region4: #{tpu_custom_call.1} parent=1 // loop_header_branch
      %17 = sbr.rel (%p15) target = $region8
    $region5: #{tpu_custom_call.1} parent=1 // loop_body
      %s19 = ssub.s32 %s14, 1
      %s20 = ssub.s32 %s14, 2
      %s30 = sadd.s32 1, %s23
      %p31 = scmp.ge.s32.totalorder %s30, 1
      %s32 = scalar_select %p31, 0, %s30
      %s33 = sadd.s32 1, %s22
      %s34 = scalar_select %p31, %s33, %s22
      %p35 = scmp.ge.s32.totalorder %s34, 1
      %s36 = scalar_select %p35, 0, %s34
      %s37 = sadd.s32 1, %s21
      %s38 = scalar_select %p35, %s37, %s21
      %p39 = scmp.ge.s32.totalorder %s38, 2
      %s40 = scalar_select %p39, 0, %s38
      %s41 = ssub.s32 %s21, %s40
      %s42 = ssub.s32 %s22, %s36
      %s43 = sor.u32 %s41, %s42
      %p44 = scmp.eq.s32.totalorder %s43, 0
      %s46 = sadd.s32 %s45, 1
      %s47 = scalar_select %p44, %s45, %s46
      %p50 = pneg %p44
      %p51 = scmp.eq.s32.totalorder %s14, 1
      %p52 = por %p50, %p51
      %p53 = scmp.ne.s32.totalorder %s45, %s48
      %p54 = scmp.eq.s32.totalorder %s14, 0
      %p55 = por %p53, %p54
      %p56 = scmp.ne.s32.totalorder %s45, %s48
      %p57 = scmp.eq.s32.totalorder %s19, 1
      %p58 = por %p56, %p57
      %p59 = scmp.ne.s32.totalorder %s48, %s49
      %p60 = scmp.eq.s32.totalorder %s19, 0
      %p61 = por %p59, %p60
      %p62 = scmp.ne.s32.totalorder %s48, %s49
      %p63 = scmp.eq.s32.totalorder %s20, 1
      %p64 = por %p62, %p63
      %p66 = scmp.ne.s32.totalorder %s49, %s65
      %p67 = scmp.eq.s32.totalorder %s20, 0
      %p68 = por %p66, %p67
      %s69 = ssub.s32 %s21, %s40
      %s70 = ssub.s32 %s23, %s32
      %s71 = sor.u32 %s69, %s70
      %p72 = scmp.eq.s32.totalorder %s71, 0
      %s74 = sadd.s32 %s73, 1
      %s75 = scalar_select %p72, %s73, %s74
      %p78 = pneg %p72
      %p79 = scmp.eq.s32.totalorder %s14, 1
      %p80 = por %p78, %p79
      %p81 = scmp.ne.s32.totalorder %s73, %s76
      %p82 = scmp.eq.s32.totalorder %s14, 0
      %p83 = por %p81, %p82
      %p84 = scmp.ne.s32.totalorder %s73, %s76
      %p85 = scmp.eq.s32.totalorder %s19, 1
      %p86 = por %p84, %p85
      %p87 = scmp.ne.s32.totalorder %s76, %s77
      %p88 = scmp.eq.s32.totalorder %s19, 0
      %p89 = por %p87, %p88
      %p90 = scmp.ne.s32.totalorder %s76, %s77
      %p91 = scmp.eq.s32.totalorder %s20, 1
      %p92 = por %p90, %p91
      %p94 = scmp.ne.s32.totalorder %s77, %s93
      %p95 = scmp.eq.s32.totalorder %s20, 0
      %p96 = por %p94, %p95
      %s97 = ssub.s32 %s21, %s40
      %s98 = ssub.s32 %s23, %s32
      %s99 = sor.u32 %s97, %s98
      %p100 = scmp.eq.s32.totalorder %s99, 0
      %s102 = sadd.s32 %s101, 1
      %s103 = scalar_select %p100, %s101, %s102
      %p106 = pneg %p100
      %p107 = scmp.eq.s32.totalorder %s14, 1
      %p108 = por %p106, %p107
      %p109 = scmp.ne.s32.totalorder %s101, %s104
      %p110 = scmp.eq.s32.totalorder %s14, 0
      %p111 = por %p109, %p110
      %p112 = scmp.ne.s32.totalorder %s101, %s104
      %p113 = scmp.eq.s32.totalorder %s19, 1
      %p114 = por %p112, %p113
      %p115 = scmp.ne.s32.totalorder %s104, %s105
      %p116 = scmp.eq.s32.totalorder %s19, 0
      %p117 = por %p115, %p116
      %p118 = scmp.ne.s32.totalorder %s104, %s105
      %p119 = scmp.eq.s32.totalorder %s20, 1
      %p120 = por %p118, %p119
      %p122 = scmp.ne.s32.totalorder %s105, %s121
      %p123 = scmp.eq.s32.totalorder %s20, 0
      %p124 = por %p122, %p123
      %s125 = ssub.s32 %s21, %s40
      %s126 = ssub.s32 %s23, %s32
      %s127 = sor.u32 %s125, %s126
      %p128 = scmp.eq.s32.totalorder %s127, 0
      %s130 = sadd.s32 %s129, 1
      %s131 = scalar_select %p128, %s129, %s130
      %p134 = pneg %p128
      %p135 = scmp.eq.s32.totalorder %s14, 1
      %p136 = por %p134, %p135
      %p137 = scmp.ne.s32.totalorder %s129, %s132
      %p138 = scmp.eq.s32.totalorder %s14, 0
      %p139 = por %p137, %p138
      %p140 = scmp.ne.s32.totalorder %s129, %s132
      %p141 = scmp.eq.s32.totalorder %s19, 1
      %p142 = por %p140, %p141
      %p143 = scmp.ne.s32.totalorder %s132, %s133
      %p144 = scmp.eq.s32.totalorder %s19, 0
      %p145 = por %p143, %p144
      %p146 = scmp.ne.s32.totalorder %s132, %s133
      %p147 = scmp.eq.s32.totalorder %s20, 1
      %p148 = por %p146, %p147
      %p150 = scmp.ne.s32.totalorder %s133, %s149
      %p151 = scmp.eq.s32.totalorder %s20, 0
      %p152 = por %p150, %p151
      %s153 = ssub.s32 %s21, %s40
      %p154 = scmp.eq.s32.totalorder %s153, 0
      %s156 = sadd.s32 %s155, 1
      %s157 = scalar_select %p154, %s155, %s156
      %p160 = pneg %p154
      %p161 = scmp.eq.s32.totalorder %s14, 1
      %p162 = por %p160, %p161
      %p163 = scmp.ne.s32.totalorder %s155, %s158
      %p164 = scmp.eq.s32.totalorder %s14, 0
      %p165 = por %p163, %p164
      %p166 = scmp.ne.s32.totalorder %s155, %s158
      %p167 = scmp.eq.s32.totalorder %s19, 1
      %p168 = por %p166, %p167
      %p169 = scmp.ne.s32.totalorder %s158, %s159
      %p170 = scmp.eq.s32.totalorder %s19, 0
      %p171 = por %p169, %p170
      %p172 = scmp.ne.s32.totalorder %s158, %s159
      %p173 = scmp.eq.s32.totalorder %s20, 1
      %p174 = por %p172, %p173
      %p176 = scmp.ne.s32.totalorder %s159, %s175
      %p177 = scmp.eq.s32.totalorder %s20, 0
      %p178 = por %p176, %p177
      %s179 = ssub.s32 %s21, %s40
      %s180 = ssub.s32 %s22, %s36
      %s181 = sor.u32 %s179, %s180
      %p182 = scmp.eq.s32.totalorder %s181, 0
      %s184 = sadd.s32 %s183, 1
      %s185 = scalar_select %p182, %s183, %s184
      %p188 = pneg %p182
      %p189 = scmp.eq.s32.totalorder %s14, 1
      %p190 = por %p188, %p189
      %p191 = scmp.ne.s32.totalorder %s183, %s186
      %p192 = scmp.eq.s32.totalorder %s14, 0
      %p193 = por %p191, %p192
      %p194 = scmp.ne.s32.totalorder %s183, %s186
      %p195 = scmp.eq.s32.totalorder %s19, 1
      %p196 = por %p194, %p195
      %p197 = scmp.ne.s32.totalorder %s186, %s187
      %p198 = scmp.eq.s32.totalorder %s19, 0
      %p199 = por %p197, %p198
      %p200 = scmp.ne.s32.totalorder %s186, %s187
      %p201 = scmp.eq.s32.totalorder %s20, 1
      %p202 = por %p200, %p201
      %p204 = scmp.ne.s32.totalorder %s187, %s203
      %p205 = scmp.eq.s32.totalorder %s20, 0
      %p206 = por %p204, %p205
      %p207 = scmp.le.s32.totalorder 1, %s14
      %p208 = scmp.lt.s32.totalorder %s14, 3
      %p209 = pnand %p207, %p208
      %p210 = pneg %p209
      // Predicated region
      $region9: #{tpu_custom_call.1} parent=5 // pred_check
        _
      $region10: #{tpu_custom_call.1} parent=5 // pred_check_branch
        %212 = sbr.rel (%p209) target = $region12
      $region11: #{tpu_custom_call.1} parent=5 // pred_region
        %s213 = ssub.s32 %s14, 1
      $region12: #{tpu_custom_call.1} parent=5 // pred_fallthru
        _
      %p214 = scmp.lt.s32.totalorder %s14, 2
      // Predicated region
      $region13: #{tpu_custom_call.1} parent=5 // pred_check
        %p215 = pneg %p214
      $region14: #{tpu_custom_call.1} parent=5 // pred_check_branch
        %217 = sbr.rel (%p215) target = $region16
      $region15: #{tpu_custom_call.1} parent=5 // pred_region
        // Predicated region
        $region17: #{tpu_custom_call.1} parent=15 // pred_check
          %p218 = pneg %p55
        $region18: #{tpu_custom_call.1} parent=15 // pred_check_branch
          %220 = sbr.rel (%p218) target = $region20
        $region19: #{tpu_custom_call.1} parent=15 // pred_region
          %s221 = smul.u32 2, %s22
          %p222 = scmp.lt.s32.totalorder %s21, 1
          %s223 = scalar_select %p222, %s21, 1
          %p224 = scmp.lt.s32.totalorder %s221, 1
          %s225 = scalar_select %p224, %s221, 1
          %s226 = smul.addr %s223, 2
          %s227 = sadd.s32 %s225, %s226
          %s228 = smul.addr %s227, 4
          %s229 = scalar_lea.vmem %s0, %s228
          %s230 = smul.u32 2, %s22
        $region20: #{tpu_custom_call.1} parent=15 // pred_fallthru
          _
        // Predicated region
        $region21: #{tpu_custom_call.1} parent=15 // pred_check
          %p231 = pneg %p83
        $region22: #{tpu_custom_call.1} parent=15 // pred_check_branch
          %233 = sbr.rel (%p231) target = $region24
        $region23: #{tpu_custom_call.1} parent=15 // pred_region
          %p234 = scmp.lt.s32.totalorder %s21, 1
          %s235 = scalar_select %p234, %s21, 1
          %p236 = scmp.lt.s32.totalorder %s23, 0
          %s237 = scalar_select %p236, %s23, 0
          %s238 = smul.addr %s235, 4
          %s239 = sadd.s32 %s237, %s238
          %s240 = smul.addr %s239, 4
          %s241 = scalar_lea.vmem %s1, %s240
        $region24: #{tpu_custom_call.1} parent=15 // pred_fallthru
          _
        // Predicated region
        $region25: #{tpu_custom_call.1} parent=15 // pred_check
          %p242 = pneg %p111
        $region26: #{tpu_custom_call.1} parent=15 // pred_check_branch
          %244 = sbr.rel (%p242) target = $region28
        $region27: #{tpu_custom_call.1} parent=15 // pred_region
          %p245 = scmp.lt.s32.totalorder %s21, 1
          %s246 = scalar_select %p245, %s21, 1
          %p247 = scmp.lt.s32.totalorder %s23, 0
          %s248 = scalar_select %p247, %s23, 0
          %s249 = sadd.s32 %s248, %s246
          %s250 = scalar_lea.vmem %s2, %s249
        $region28: #{tpu_custom_call.1} parent=15 // pred_fallthru
          _
        // Predicated region
        $region29: #{tpu_custom_call.1} parent=15 // pred_check
          %p251 = pneg %p139
        $region30: #{tpu_custom_call.1} parent=15 // pred_check_branch
          %253 = sbr.rel (%p251) target = $region32
        $region31: #{tpu_custom_call.1} parent=15 // pred_region
          %s254 = smul.u32 8, %s23
          %p255 = scmp.lt.s32.totalorder %s21, 1
          %s256 = scalar_select %p255, %s21, 1
          %p257 = scmp.lt.s32.totalorder %s254, 7
          %s258 = scalar_select %p257, %s254, 7
          %s259 = smul.addr %s256, 8
          %s260 = sadd.s32 %s258, %s259
          %s261 = smul.addr %s260, 4
          %s262 = scalar_lea.vmem %s3, %s261
          %s263 = smul.u32 8, %s23
        $region32: #{tpu_custom_call.1} parent=15 // pred_fallthru
          _
        // Predicated region
        $region33: #{tpu_custom_call.1} parent=15 // pred_check
          %p264 = pneg %p165
        $region34: #{tpu_custom_call.1} parent=15 // pred_check_branch
          %266 = sbr.rel (%p264) target = $region36
        $region35: #{tpu_custom_call.1} parent=15 // pred_region
          %p267 = scmp.lt.s32.totalorder %s21, 1
          %s268 = scalar_select %p267, %s21, 1
          %s269 = scalar_lea.vmem %s4, %s268
        $region36: #{tpu_custom_call.1} parent=15 // pred_fallthru
          _
      $region16: #{tpu_custom_call.1} parent=5 // pred_fallthru
        _
      %p270 = scmp.le.s32.totalorder 1, %s14
      %p271 = scmp.lt.s32.totalorder %s14, 3
      %p272 = pnand %p270, %p271
      %p273 = pneg %p272
      // Predicated region
      $region37: #{tpu_custom_call.1} parent=5 // pred_check
        _
      $region38: #{tpu_custom_call.1} parent=5 // pred_check_branch
        %275 = sbr.rel (%p272) target = $region40
      $region39: #{tpu_custom_call.1} parent=5 // pred_region
        %s276 = ssub.s32 %s14, 1
        %s277 = smul.u32 2, %s25
        %p278 = scmp.lt.s32.totalorder %s24, 1
        %s279 = scalar_select %p278, %s24, 1
        %p280 = scmp.lt.s32.totalorder %s277, 1
        %s281 = scalar_select %p280, %s277, 1
        %s282 = smul.addr %s279, 2
        %s283 = sadd.s32 %s281, %s282
        %s284 = smul.addr %s283, 4
        %s285 = scalar_lea.vmem %s0, %s284
        %p286 = pneg %p61
        %p287 = pneg %p58
        %p288 = scmp.lt.s32.totalorder %s24, 1
        %s289 = scalar_select %p288, %s24, 1
        %p290 = scmp.lt.s32.totalorder %s26, 0
        %s291 = scalar_select %p290, %s26, 0
        %s292 = smul.addr %s289, 4
        %s293 = sadd.s32 %s291, %s292
        %s294 = smul.addr %s293, 4
        %s295 = scalar_lea.vmem %s1, %s294
        %p296 = pneg %p89
        %p297 = pneg %p86
        %p298 = scmp.lt.s32.totalorder %s24, 1
        %s299 = scalar_select %p298, %s24, 1
        %p300 = scmp.lt.s32.totalorder %s26, 0
        %s301 = scalar_select %p300, %s26, 0
        %s302 = sadd.s32 %s301, %s299
        %s303 = scalar_lea.vmem %s2, %s302
        %p304 = pneg %p117
        %p305 = pneg %p114
        %s306 = smul.u32 8, %s26
        %p307 = scmp.lt.s32.totalorder %s24, 1
        %s308 = scalar_select %p307, %s24, 1
        %p309 = scmp.lt.s32.totalorder %s306, 7
        %s310 = scalar_select %p309, %s306, 7
        %s311 = smul.addr %s308, 8
        %s312 = sadd.s32 %s310, %s311
        %s313 = smul.addr %s312, 4
        %s314 = scalar_lea.vmem %s3, %s313
        %p315 = pneg %p145
        %p316 = pneg %p142
        %p317 = scmp.lt.s32.totalorder %s24, 1
        %s318 = scalar_select %p317, %s24, 1
        %s319 = scalar_lea.vmem %s4, %s318
        %p320 = pneg %p171
        %p321 = pneg %p168
        %p322 = pneg %p199
        %p323 = pneg %p196
        %s324 = sand.u32 %s186, 1
        %s325 = scalar_lea.sflag [#allocation4], %s324
        %s326 = sand.u32 %s186, 1
        %s327 = smul.addr %s326, 16
        %s328 = scalar_lea.vmem [#allocation3], %s327
        %s329 = smul.u32 2, %s25
        %p330 = scmp.lt.s32.totalorder %s24, 1
        %s331 = scalar_select %p330, %s24, 1
        %p332 = scmp.lt.s32.totalorder %s329, 1
        %s333 = scalar_select %p332, %s329, 1
        %s334 = smul.addr %s331, 2
        %s335 = sadd.s32 %s333, %s334
        %s336 = smul.addr %s335, 4
        %s337 = scalar_lea.vmem %s0, %s336
        %s338 = smul.u32 2, %s25
        %p339 = scmp.lt.s32.totalorder %s24, 1
        %s340 = scalar_select %p339, %s24, 1
        %p341 = scmp.lt.s32.totalorder %s26, 0
        %s342 = scalar_select %p341, %s26, 0
        %s343 = smul.addr %s340, 4
        %s344 = sadd.s32 %s342, %s343
        %s345 = smul.addr %s344, 4
        %s346 = scalar_lea.vmem %s1, %s345
        %p347 = scmp.lt.s32.totalorder %s24, 1
        %s348 = scalar_select %p347, %s24, 1
        %p349 = scmp.lt.s32.totalorder %s26, 0
        %s350 = scalar_select %p349, %s26, 0
        %s351 = sadd.s32 %s350, %s348
        %s352 = scalar_lea.vmem %s2, %s351
        %s353 = smul.u32 8, %s26
        %p354 = scmp.lt.s32.totalorder %s24, 1
        %s355 = scalar_select %p354, %s24, 1
        %p356 = scmp.lt.s32.totalorder %s353, 7
        %s357 = scalar_select %p356, %s353, 7
        %s358 = smul.addr %s355, 8
        %s359 = sadd.s32 %s357, %s358
        %s360 = smul.addr %s359, 4
        %s361 = scalar_lea.vmem %s3, %s360
        %s362 = smul.u32 8, %s26
        %p363 = scmp.lt.s32.totalorder %s24, 1
        %s364 = scalar_select %p363, %s24, 1
        %s365 = scalar_lea.vmem %s4, %s364
        %s366 = smul.u32 2, %s25
        %p368 = scmp.eq.s32.totalorder %s26, 0
        // Predicated region
        $region41: #{tpu_custom_call.1} parent=39 // pred_check
          %p369 = pneg %p368
        $region42: #{tpu_custom_call.1} parent=39 // pred_check_branch
          %371 = sbr.rel (%p369) target = $region44
        $region43: #{tpu_custom_call.1} parent=39 // pred_region
          %vm372 = vcmask 261120
          %373 = vst.msk [vmem:[#allocation2] sm:$0xff] %vm372, 0.0
          %374 = vst.msk [vmem:[#allocation2 + $0x8] sm:$0xff] %vm372, 0.0
        $region44: #{tpu_custom_call.1} parent=39 // pred_fallthru
          _
        %v375 = vld [vmem:[%s337] sm:$0xf]
        %v376 = vld [vmem:[%s337 + $0x4] sm:$0xf]
        %v377 = vld [vmem:[%s346] sm:$0xf]
        %v378 = vld [vmem:[%s346 + $0x4] sm:$0xf]
        %v379 = vld [vmem:[%s346 + $0x8] sm:$0xf]
        %v380 = vld [vmem:[%s346 + $0xc] sm:$0xf]
        %v381 = vld [vmem:[%s352] sm:$0x1]
        %v383 = vlaneseq
        %v384 = vshrl.u32 %v383, 7
        %v385 = vsub.s32 0, %v384
        %v386 = vrot.slane %v381, %v385
        %v390 = vunpack.c.l.b16 %v375
        %v391 = vunpack.c.l.b16 %v376
        %v392 = vpack.c.b16 %v391, %v390
        %v397 = vunpack.c.l.b16 %v377
        %v398 = vunpack.c.l.b16 %v378
        %v399 = vunpack.c.l.b16 %v379
        %v400 = vunpack.c.l.b16 %v380
        %v401 = vpack.c.b16 %v398, %v397
        %v402 = vpack.c.b16 %v400, %v399
        %vm405 = vcmask 261120
        %v407 = vsel %vm405, %v392, 0
        %409 = vmatprep.subr.bf16.mxu0 0
        %410 = vmatpush1.bf16.msra.mxu0 0
        %411 = vmatprep.subr.bf16.mxu0 0
        %412 = vmatpush1.bf16.msra.mxu0 0
        %413 = vmatprep.subr.bf16.mxu0 0
        %414 = vmatpush1.bf16.msra.mxu0 0
        %415 = vmatprep.subr.bf16.mxu0 0
        %416 = vmatpush1.bf16.msra.mxu0 0
        %417 = vmatprep.subr.bf16.mxu0 0
        %418 = vmatpush1.bf16.msra.mxu0 0
        %419 = vmatprep.subr.bf16.mxu0 0
        %420 = vmatpush1.bf16.msra.mxu0 0
        %421 = vmatprep.subr.bf16.mxu0 0
        %422 = vmatpush1.bf16.msra.mxu0 %v402
        %423 = vmatprep.subr.bf16.mxu0 0
        %424 = vmatpush1.bf16.msra.mxu0 %v401
        %425 = vmatprep.subr.bf16.mxu0 0
        %426 = vmatpush2.bf16.msra.mxu0 0
        %427 = vmatprep.subr.bf16.mxu0 0
        %428 = vmatpush2.bf16.msra.mxu0 0
        %429 = vmatprep.subr.bf16.mxu0 0
        %430 = vmatpush2.bf16.msra.mxu0 0
        %431 = vmatprep.subr.bf16.mxu0 0
        %432 = vmatpush2.bf16.msra.mxu0 0
        %433 = vmatprep.subr.bf16.mxu0 0
        %434 = vmatpush2.bf16.msra.mxu0 0
        %435 = vmatprep.subr.bf16.mxu0 0
        %436 = vmatpush2.bf16.msra.mxu0 0
        %437 = vmatprep.subr.bf16.mxu0 0
        %438 = vmatpush2.bf16.msra.mxu0 0
        %439 = vmatprep.subr.bf16.mxu0 0
        %440 = vmatpush2.bf16.msra.mxu0 0
        %441 = vmatprep.mubr.bf16.mxu0 0
        %442 = vmatmul.mubr.bf16.gmra.mxu0 %v407
        %v443 = vpop.f32.mrf.mxu0
        %v444 = vadd.f32 %v386, %v443
        %v445 = vpop.f32.mrf.mxu0
        %v446 = vpop.f32.mrf.mxu0
        %v447 = vadd.f32 %v386, %v446
        %v448 = vpop.f32.mrf.mxu0
        %449 = vdwg.mxu0
        %v450 = vmax.f32 %v444, 0.0
        %v451 = vmax.f32 %v447, 0.0
        %v452 = vld [vmem:[#allocation2] sm:$0xff]
        %v453 = vld [vmem:[#allocation2 + $0x8] sm:$0xff]
        %v454 = vpack.c.bf16 %v451, %v450
        %v455 = vld [vmem:[%s361] sm:$0xf]
        %v456 = vld [vmem:[%s361 + $0x4] sm:$0xf]
        %v457 = vld [vmem:[%s361 + $0x8] sm:$0xf]
        %v458 = vld [vmem:[%s361 + $0xc] sm:$0xf]
        %v459 = vld [vmem:[%s361 + $0x10] sm:$0xf]
        %v460 = vld [vmem:[%s361 + $0x14] sm:$0xf]
        %v461 = vld [vmem:[%s361 + $0x18] sm:$0xf]
        %v462 = vld [vmem:[%s361 + $0x1c] sm:$0xf]
        %v471 = vunpack.c.l.b16 %v455
        %v472 = vunpack.c.l.b16 %v456
        %v473 = vunpack.c.l.b16 %v457
        %v474 = vunpack.c.l.b16 %v458
        %v475 = vunpack.c.l.b16 %v459
        %v476 = vunpack.c.l.b16 %v460
        %v477 = vunpack.c.l.b16 %v461
        %v478 = vunpack.c.l.b16 %v462
        %v479 = vpack.c.b16 %v472, %v471
        %v480 = vpack.c.b16 %v474, %v473
        %v481 = vpack.c.b16 %v476, %v475
        %v482 = vpack.c.b16 %v478, %v477
        %vm487 = vcmask 523264
        %v489 = vsel %vm487, %v454, 0
        %491 = vmatprep.subr.bf16.mxu0 0
        %492 = vmatpush1.bf16.msra.mxu0 0
        %493 = vmatprep.subr.bf16.mxu0 0
        %494 = vmatpush1.bf16.msra.mxu0 0
        %495 = vmatprep.subr.bf16.mxu0 0
        %496 = vmatpush1.bf16.msra.mxu0 0
        %497 = vmatprep.subr.bf16.mxu0 0
        %498 = vmatpush1.bf16.msra.mxu0 0
        %499 = vmatprep.subr.bf16.mxu0 0
        %500 = vmatpush1.bf16.msra.mxu0 %v482
        %501 = vmatprep.subr.bf16.mxu0 0
        %502 = vmatpush1.bf16.msra.mxu0 %v481
        %503 = vmatprep.subr.bf16.mxu0 0
        %504 = vmatpush1.bf16.msra.mxu0 %v480
        %505 = vmatprep.subr.bf16.mxu0 0
        %506 = vmatpush1.bf16.msra.mxu0 %v479
        %507 = vmatprep.subr.bf16.mxu0 0
        %508 = vmatpush2.bf16.msra.mxu0 0
        %509 = vmatprep.subr.bf16.mxu0 0
        %510 = vmatpush2.bf16.msra.mxu0 0
        %511 = vmatprep.subr.bf16.mxu0 0
        %512 = vmatpush2.bf16.msra.mxu0 0
        %513 = vmatprep.subr.bf16.mxu0 0
        %514 = vmatpush2.bf16.msra.mxu0 0
        %515 = vmatprep.subr.bf16.mxu0 0
        %516 = vmatpush2.bf16.msra.mxu0 0
        %517 = vmatprep.subr.bf16.mxu0 0
        %518 = vmatpush2.bf16.msra.mxu0 0
        %519 = vmatprep.subr.bf16.mxu0 0
        %520 = vmatpush2.bf16.msra.mxu0 0
        %521 = vmatprep.subr.bf16.mxu0 0
        %522 = vmatpush2.bf16.msra.mxu0 0
        %523 = vmatprep.mubr.bf16.mxu0 0
        %524 = vmatmul.mubr.bf16.gmra.mxu0 %v489
        %v525 = vpop.f32.mrf.mxu0
        %v526 = vadd.f32 0.0, %v525
        %v527 = vpop.f32.mrf.mxu0
        %v528 = vpop.f32.mrf.mxu0
        %v529 = vadd.f32 0.0, %v528
        %v530 = vpop.f32.mrf.mxu0
        %531 = vdwg.mxu0
        %v532 = vadd.f32 %v452, %v526
        %v533 = vadd.f32 %v453, %v529
        %534 = vst.msk [vmem:[#allocation2] sm:$0xff] %vm405, %v532
        %535 = vst.msk [vmem:[#allocation2 + $0x8] sm:$0xff] %vm405, %v533
        // Predicated region
        $region45: #{tpu_custom_call.1} parent=39 // pred_check
          %p536 = pneg %p368
        $region46: #{tpu_custom_call.1} parent=39 // pred_check_branch
          %538 = sbr.rel (%p536) target = $region48
        $region47: #{tpu_custom_call.1} parent=39 // pred_region
          %v539 = vld [vmem:[#allocation2] sm:$0xff]
          %v540 = vld [vmem:[#allocation2 + $0x8] sm:$0xff]
          %v541 = vld [vmem:[%s365] sm:$0x1]
          %v543 = vlaneseq
          %v544 = vshrl.u32 %v543, 7
          %v545 = vsub.s32 0, %v544
          %v546 = vrot.slane %v541, %v545
          %v548 = vadd.f32 %v539, %v546
          %v549 = vadd.f32 %v540, %v546
          %550 = vst.msk [vmem:[%s328] sm:$0xff] %vm405, %v548
          %551 = vst.msk [vmem:[%s328 + $0x8] sm:$0xff] %vm405, %v549
        $region48: #{tpu_custom_call.1} parent=39 // pred_fallthru
          _
        %s552 = sand.u32 %s186, 1
        %s553 = scalar_lea.sflag [#allocation4], %s552
        %s554 = sand.u32 %s186, 1
        %s555 = smul.addr %s554, 16
        %s556 = scalar_lea.vmem [#allocation3], %s555
        // Predicated region
        $region49: #{tpu_custom_call.1} parent=39 // pred_check
          %p557 = pneg %p196
        $region50: #{tpu_custom_call.1} parent=39 // pred_check_branch
          %559 = sbr.rel (%p557) target = $region52
        $region51: #{tpu_custom_call.1} parent=39 // pred_region
          %s560 = smul.u32 2, %s25
          %s562 = ssub.s32 256, 256
          %563 = vsyncadd %s553, %s562
          %s564 = smul.addr %s24, 2
          %s565 = sadd.s32 %s560, %s564
          %s566 = smul.addr %s565, 128
          %s567 = scalar_lea.hbm %s5, %s566
          %s568 = sshll.u32 %s556, 4
          %s569 = int_to_ptr.vmem [resolvable:$true] %s568
          %574 = dma.vmem_to_hbm [thread:$0]  %s569, 256, %s567, %s553, 128, 128, 8
        $region52: #{tpu_custom_call.1} parent=39 // pred_fallthru
          _
      $region40: #{tpu_custom_call.1} parent=5 // pred_fallthru
        _
      %p575 = scmp.le.s32.totalorder 2, %s14
      // Predicated region
      $region53: #{tpu_custom_call.1} parent=5 // pred_check
        %p576 = pneg %p575
      $region54: #{tpu_custom_call.1} parent=5 // pred_check_branch
        %578 = sbr.rel (%p576) target = $region56
      $region55: #{tpu_custom_call.1} parent=5 // pred_region
        %s579 = ssub.s32 %s14, 2
        // Predicated region
        $region57: #{tpu_custom_call.1} parent=55 // pred_check
          %p580 = pneg %p202
        $region58: #{tpu_custom_call.1} parent=55 // pred_check_branch
          %582 = sbr.rel (%p580) target = $region60
        $region59: #{tpu_custom_call.1} parent=55 // pred_region
          %s583 = sand.u32 %s187, 1
          %s584 = scalar_lea.sflag [#allocation4], %s583
          %s585 = sand.u32 %s187, 1
          %s586 = smul.addr %s585, 16
          %s587 = scalar_lea.vmem [#allocation3], %s586
          %588 = dma.done %s584, 256
        $region60: #{tpu_custom_call.1} parent=55 // pred_fallthru
          _
      $region56: #{tpu_custom_call.1} parent=5 // pred_fallthru
        _
    $region6: #{tpu_custom_call.1} parent=1 // loop_footer
      %s18 = sadd.s32 1, %s14
    $region7: #{tpu_custom_call.1} parent=1 // loop_footer_branch
      %13 = sbr.rel target = $region3
    $region8: #{tpu_custom_call.1} parent=1 // loop_exit
      _
    %589 = vsyncpa [#allocation4], 1
    %s590 = scalar_lea.sflag [#allocation4], 1
    %591 = vsyncpa %s590, 1

</llo_original>
